<compile_context>
chip_gen: v5e
topology: v5e:2x2
jax: 0.10.0
libtpu: 0.0.40
codegen_flags: <defaults>
</compile_context>

<pallas_src>
import functools

import jax
import jax.numpy as jnp
from jax import lax
from jax.experimental import pallas as pl
from jax.experimental.pallas import tpu as pltpu

EPS = 1e-5  # PyTorch BatchNorm2d default eps


# ----------------------------------------------------------------------------
# per-generation sizing helpers
# ----------------------------------------------------------------------------
def _vmem_budget_bytes():
    """Scoped-VMEM budget ~= 75% of physical VMEM (96 MiB on 128-MiB v5e/v6e,
    48 MiB on 64-MiB v7x); conservative fallback if the query is unavailable."""
    cap = 64 * 1024 * 1024
    try:
        info = pltpu.get_tpu_info()
        cap = int(getattr(info, "vmem_capacity_bytes", cap) or cap)
    except Exception:
        pass
    return max(32 * 1024 * 1024, (cap * 3) // 4)


def _round_up(x, m):
    return ((x + m - 1) // m) * m


def _pick_tile_m(m_total, depth, po, vmem_budget):
    """Largest lane-tile (multiple of 128) whose double-buffered streams fit in
    half the VMEM budget, capped so small problems keep >=2 grid steps (v7x
    megacore) and so we never over-pad tiny M."""
    per_lane = max(
        2 * (2 * depth + 2 * po),   # GEMM: (D,tm) bf16 in + (Po,tm) bf16 out, x2 buffers
        2 * (2 * po + 4 * po),      # epilogue: (Po,tm) bf16 in + (Po,tm) f32 out, x2 buffers
    )
    cap = (vmem_budget // 2) // max(per_lane, 1)
    cap = max(128, (cap // 128) * 128)
    tm = min(cap, 8192)
    if m_total > 128:
        tm = min(tm, _round_up(-(-m_total // 2), 128))  # >=2 tiles when possible
    else:
        tm = 128
    return tm


# ----------------------------------------------------------------------------
# kernels
# ----------------------------------------------------------------------------
def _gemm_stats_kernel(w_ref, p_ref, o_ref, st_ref, *, tile_m, m_total):
    # w_ref : (Po, D)      bf16  fused sub-pixel weight (zero-padded taps)
    # p_ref : (D, tile_m)  bf16  D-major im2col patches, M-tile on the lane axis
    # o_ref : (Po, tile_m) bf16  transposed-conv output tile (lane-dense store)
    # st_ref: (1, Po, 2)   f32   per-tile BN partials: [...,0]=sum, [...,1]=centered ssq
    acc = lax.dot_general(
        w_ref[...], p_ref[...],
        dimension_numbers=(((1,), (0,)), ((), ())),
        preferred_element_type=jnp.float32,
    )                                                     # (Po, tile_m) on the MXU
    y = acc.astype(jnp.bfloat16)                          # bf16 intermediate stream
    o_ref[...] = y

    # Single-pass BN partials over the *stored* (bf16-rounded) values.
    # Per-tile centered sum-of-squares; tiles are merged with Chan's formula in
    # the wrapper, avoiding catastrophic cancellation of E[x^2] - mean^2.
    yf = y.astype(jnp.float32)
    i = pl.program_id(0)
    valid = jnp.minimum(tile_m, m_total - i * tile_m)     # real (unpadded) lanes
    col = lax.broadcasted_iota(jnp.int32, yf.shape, 1)
    tile_sum = jnp.sum(yf, axis=1, keepdims=True)         # padded lanes are exactly 0
    tile_mean = tile_sum / valid.astype(jnp.float32)
    d = jnp.where(col < valid, yf - tile_mean, 0.0)
    st_ref[0, :, 0:1] = tile_sum
    st_ref[0, :, 1:2] = jnp.sum(d * d, axis=1, keepdims=True)


def _bn_relu_kernel(scale_ref, shift_ref, y_ref, o_ref):
    # scale/shift: (Po, 1) f32 ; y_ref: (Po, tile_m) bf16 ; o_ref: (Po, tile_m) f32
    y = y_ref[...].astype(jnp.float32)
    o_ref[...] = jnp.maximum(y * scale_ref[...] + shift_ref[...], 0.0)


# ----------------------------------------------------------------------------
# wrapper
# ----------------------------------------------------------------------------
def deconv2d_unit(x_nchw, wt, gamma, beta, *, stride, kernel_size, padding=0,
                  tile_m=None):
    """Forward of Deconv2dUnit (bn=True so no conv bias; relu=True).

    x_nchw: (N, Cin, H, W) float32
    wt:     (Cin, Cout, K, K)   PyTorch ConvTranspose2d weight layout
    gamma/beta: (Cout,) BN affine params
    """
    N, Cin, H, W = x_nchw.shape
    Cout = wt.shape[1]
    K, s, p = kernel_size, stride, padding
    assert s in (1, 2)

    # Full transposed-conv output size, then the module's crop to (2H, 2W).
    H_full = (H - 1) * s - 2 * p + K
    W_full = (W - 1) * s - 2 * p + K
    Hc = min(H_full, s * H) if s == 2 else H_full
    Wc = min(W_full, s * W) if s == 2 else W_full
    # TODO(synk): handle stride-2 configs whose cropped output is not a multiple
    # of the stride (e.g. K=1); usual K>=2, padding=0 configs give Hc=2H, Wc=2W.
    assert Hc % s == 0 and Wc % s == 0
    R, C = Hc // s, Wc // s               # sub-pixel block grid (GEMM lane dims)

    # ---- static polyphase tap bookkeeping (trace time) ----------------------
    taps_h = {ph: [(kh, (ph + p - kh) // s) for kh in range(K)
                   if (ph + p - kh) % s == 0] for ph in range(s)}
    taps_w = {pw: [(kw, (pw + p - kw) // s) for kw in range(K)
                   if (pw + p - kw) % s == 0] for pw in range(s)}
    offs_h = sorted({o for ph in range(s) for _, o in taps_h[ph]})
    offs_w = sorted({o for pw in range(s) for _, o in taps_w[pw]})
    Th, Tw = len(offs_h), len(offs_w)
    D = Th * Tw * Cin                     # contraction depth
    Po = s * s * Cout                     # fused (sub-pixel x channel) rows

    M = N * R * C
    vmem_budget = _vmem_budget_bytes()
    if tile_m is None:
        tile_m = _pick_tile_m(M, D, Po, vmem_budget)
    n_tiles = max(1, pl.cdiv(M, tile_m))
    M_pad = n_tiles * tile_m

    # ---- D-major im2col gather (no physical transpose of the patch array) ---
    # Transpose only the (small) input to channel-major once, stack the taps as
    # leading axes: the flattened result is already (D, M).
    # TODO(synk): do this gather in-kernel with a halo'd DMA to avoid the
    #             Th*Tw-times-replicated patch array in HBM.
    x_cn = jnp.transpose(x_nchw, (1, 0, 2, 3)).astype(jnp.bfloat16)   # (Cin,N,H,W)
    pad_t = max(0, -offs_h[0])
    pad_b = max(0, (R - 1) + offs_h[-1] - (H - 1))
    pad_l = max(0, -offs_w[0])
    pad_r = max(0, (C - 1) + offs_w[-1] - (W - 1))
    xp = jnp.pad(x_cn, ((0, 0), (0, 0), (pad_t, pad_b), (pad_l, pad_r)))
    pat = jnp.stack(
        [xp[:, :, pad_t + oh: pad_t + oh + R, pad_l + ow: pad_l + ow + C]
         for oh in offs_h for ow in offs_w], axis=0)      # (Th*Tw, Cin, N, R, C)
    pat = pat.reshape(D, M)
    pat = jnp.pad(pat, ((0, 0), (0, M_pad - M)))          # (D, M_pad), zeros in pad

    # ---- fused sub-pixel weight (Po, D), zeros where a tap is unused ---------
    w_sub = jnp.zeros((Th, Tw, Cin, s, s, Cout), jnp.float32)
    for ph in range(s):
        for kh, oh in taps_h[ph]:
            ih = offs_h.index(oh)
            for pw in range(s):
                for kw, ow in taps_w[pw]:
                    iw = offs_w.index(ow)
                    w_sub = w_sub.at[ih, iw, :, ph, pw, :].set(wt[:, :, kh, kw])
    w_sub = w_sub.reshape(D, Po).T.astype(jnp.bfloat16)                # (Po, D)

    # ---- Pallas call 1: transposed-conv GEMM + single-pass BN partials ------
    gemm = functools.partial(_gemm_stats_kernel, tile_m=tile_m, m_total=M)
    gemm_flops = 2 * Po * D * M_pad
    gemm_bytes = Po * D * 2 + D * M_pad * 2 + Po * M_pad * 2 + n_tiles * Po * 2 * 4
    conv_out, stats = pl.pallas_call(
        gemm,
        grid=(n_tiles,),
        in_specs=[
            pl.BlockSpec((Po, D), lambda i: (0, 0)),
            pl.BlockSpec((D, tile_m), lambda i: (0, i)),
        ],
        out_specs=[
            pl.BlockSpec((Po, tile_m), lambda i: (0, i)),
            pl.BlockSpec((1, Po, 2), lambda i: (i, 0, 0)),
        ],
        out_shape=[
            jax.ShapeDtypeStruct((Po, M_pad), jnp.bfloat16),
            jax.ShapeDtypeStruct((n_tiles, Po, 2), jnp.float32),
        ],
        compiler_params=pltpu.CompilerParams(
            dimension_semantics=("parallel",),
            vmem_limit_bytes=vmem_budget),
        cost_estimate=pl.CostEstimate(
            flops=gemm_flops, transcendentals=0, bytes_accessed=gemm_bytes),
    )(w_sub, pat)

    # ---- global BN statistics: Chan merge of per-(tile, phase) groups --------
    counts = jnp.minimum(tile_m, M - jnp.arange(n_tiles) * tile_m).astype(jnp.float32)
    sums = stats[:, :, 0].reshape(n_tiles, s * s, Cout)
    css = stats[:, :, 1].reshape(n_tiles, s * s, Cout)
    cnt_g = counts[:, None, None]
    total = float(M * s * s)                              # = N*Hc*Wc per channel
    sum_c = jnp.sum(sums, axis=(0, 1))                    # (Cout,)
    mean_c = sum_c / total
    mean_g = sums / cnt_g
    m2_c = jnp.sum(css, axis=(0, 1)) + jnp.sum(cnt_g * (mean_g - mean_c) ** 2,
                                               axis=(0, 1))
    var_c = m2_c / total                                  # biased var (train BN)
    inv_std = lax.rsqrt(var_c + EPS)
    scale_c = gamma * inv_std
    shift_c = beta - mean_c * scale_c
    scale = jnp.tile(scale_c, s * s).reshape(Po, 1)
    shift = jnp.tile(shift_c, s * s).reshape(Po, 1)

    # ---- Pallas call 2: normalize + ReLU epilogue (lane-dense, bf16 in) ------
    ep_bytes = Po * M_pad * 2 + Po * M_pad * 4 + 2 * Po * 4
    y_mat = pl.pallas_call(
        _bn_relu_kernel,
        grid=(n_tiles,),
        in_specs=[
            pl.BlockSpec((Po, 1), lambda i: (0, 0)),
            pl.BlockSpec((Po, 1), lambda i: (0, 0)),
            pl.BlockSpec((Po, tile_m), lambda i: (0, i)),
        ],
        out_specs=pl.BlockSpec((Po, tile_m), lambda i: (0, i)),
        out_shape=jax.ShapeDtypeStruct((Po, M_pad), jnp.float32),
        compiler_params=pltpu.CompilerParams(
            dimension_semantics=("parallel",),
            vmem_limit_bytes=vmem_budget),
        cost_estimate=pl.CostEstimate(
            flops=3 * Po * M_pad, transcendentals=0, bytes_accessed=ep_bytes),
    )(scale, shift, conv_out)

    # ---- sub-pixel (depth-to-space) back to NCHW (layout plumbing) ----------
    # TODO(synk): fold this depth-to-space into the epilogue kernel (write
    #             (N,Cout,R,s,C,s)-shaped blocks) to save one HBM pass.
    y = y_mat[:, :M].reshape(s, s, Cout, N, R, C)          # (ph, pw, co, n, r, c)
    y = jnp.transpose(y, (3, 2, 4, 0, 5, 1)).reshape(N, Cout, Hc, Wc)
    return y


# ----------------------------------------------------------------------------
# pure-JAX reference + per-element tolerance for the bf16 intermediate
# ----------------------------------------------------------------------------
def reference_and_tol(x_nchw, wt, gamma, beta, *, stride, kernel_size, padding=0):
    """Reference forward (f32 intermediate) and an elementwise error bound.

    The kernel streams the transposed-conv intermediate in bf16, so the BN
    numerator picks up one extra rounding with relative error <= 2^-9; the
    bound |y|*2^-8*scale + 1e-3 covers that plus accumulation-order and
    Chan-merged-statistics differences.
    """
    N, Cin, H, W = x_nchw.shape
    K, s = kernel_size, stride
    xb = x_nchw.astype(jnp.bfloat16).astype(jnp.float32)
    wb = wt.astype(jnp.bfloat16).astype(jnp.float32)
    w_conv = jnp.transpose(wb[:, :, ::-1, ::-1], (2, 3, 0, 1))  # (K,K,Cin,Cout)
    x = jnp.transpose(xb, (0, 2, 3, 1))
    pad = K - 1 - padding
    y = lax.conv_general_dilated(
        x, w_conv, window_strides=(1, 1),
        padding=[(pad, pad), (pad, pad)],
        lhs_dilation=(s, s),
        dimension_numbers=("NHWC", "HWIO", "NHWC"),
        precision=lax.Precision.HIGHEST,
    )
    if s == 2:
        y = y[:, :2 * H, :2 * W, :]
    mean = jnp.mean(y, axis=(0, 1, 2), keepdims=True)
    var = jnp.mean((y - mean) ** 2, axis=(0, 1, 2), keepdims=True)
    scale = lax.rsqrt(var + EPS) * gamma
    out = jnp.maximum((y - mean) * scale + beta, 0.0)
    tol = jnp.abs(y) * (2.0 ** -8) * jnp.abs(scale) + 1e-3
    return (jnp.transpose(out, (0, 3, 1, 2)),
            jnp.transpose(tol, (0, 3, 1, 2)))


if __name__ == "__main__":
    # Deconv2dUnit(in_channels=4, out_channels=8, kernel_size=3, stride=2,
    #              relu=True, bn=True) -> ConvTranspose2d(4, 8, 3, stride=2, bias=False)
    N, Cin, H, W = 2, 4, 16, 16
    Cout, K = 8, 3

    key = jax.random.PRNGKey(0)
    kx, kw = jax.random.split(key)
    x = jax.random.normal(kx, (N, Cin, H, W), dtype=jnp.float32)
    wt = 0.1 * jax.random.normal(kw, (Cin, Cout, K, K), dtype=jnp.float32)
    gamma = jnp.ones((Cout,), dtype=jnp.float32)   # BN weight init
    beta = jnp.zeros((Cout,), dtype=jnp.float32)   # BN bias init

    # stride = 2 path (with the module's crop to 2H x 2W)
    out2 = jax.block_until_ready(
        deconv2d_unit(x, wt, gamma, beta, stride=2, kernel_size=K))
    ref2, tol2 = reference_and_tol(x, wt, gamma, beta, stride=2, kernel_size=K)
    assert out2.shape == (N, Cout, 2 * H, 2 * W), out2.shape
    assert bool(jnp.all(jnp.abs(out2 - ref2) <= tol2)), \
        float(jnp.max(jnp.abs(out2 - ref2) - tol2))

    # stride = 1 path (module default)
    out1 = jax.block_until_ready(
        deconv2d_unit(x, wt, gamma, beta, stride=1, kernel_size=K))
    ref1, tol1 = reference_and_tol(x, wt, gamma, beta, stride=1, kernel_size=K)
    assert out1.shape == (N, Cout, H + K - 1, W + K - 1), out1.shape
    assert bool(jnp.all(jnp.abs(out1 - ref1) <= tol1)), \
        float(jnp.max(jnp.abs(out1 - ref1) - tol1))

    print("KERNEL_OK")
</pallas_src>

<mosaic_0001>
module attributes {stable_mosaic.version = 11 : i64} {
  func.func @_gemm_stats_kernel(%arg0: i32, %arg1: memref<32x16xbf16, #tpu.memory_space<vmem>>, %arg2: memref<16x256xbf16, #tpu.memory_space<vmem>>, %arg3: memref<32x256xbf16, #tpu.memory_space<vmem>>, %arg4: memref<1x32x2xf32, #tpu.memory_space<vmem>>) attributes {dimension_semantics = [#tpu.dimension_semantics<parallel>], iteration_bounds = array<i64: 2>, scalar_prefetch = 0 : i64, scratch_operands = 0 : i64, tpu.core_type = #tpu.core_type<tc>, window_params = [{pipeline_mode = #tpu.pipeline_mode<synchronous>, transform_indices = @transform_0, window_bounds = array<i64: 32, 16>}, {transform_indices = @transform_1, window_bounds = array<i64: 16, 256>}, {transform_indices = @transform_2, window_bounds = array<i64: 32, 256>}, {transform_indices = @transform_3, window_bounds = array<i64: 1, 32, 2>}]} {
    %c0 = arith.constant 0 : index
    %c0_0 = arith.constant 0 : index
    %0 = vector.load %arg1[%c0, %c0_0] : memref<32x16xbf16, #tpu.memory_space<vmem>>, vector<32x16xbf16>
    %c0_1 = arith.constant 0 : index
    %c0_2 = arith.constant 0 : index
    %1 = vector.load %arg2[%c0_1, %c0_2] : memref<16x256xbf16, #tpu.memory_space<vmem>>, vector<16x256xbf16>
    %cst = arith.constant dense<0.000000e+00> : vector<32x256xf32>
    %2 = tpu.matmul %0, %1, %cst {dimension_numbers = #tpu.dot_dimension_numbers<[1], [0], [0], [1], [0, 0, 1, 1], [], []>} : vector<32x16xbf16>, vector<16x256xbf16>, vector<32x256xf32> -> vector<32x256xf32>
    %3 = arith.truncf %2 : vector<32x256xf32> to vector<32x256xbf16>
    %c0_3 = arith.constant 0 : index
    %c0_4 = arith.constant 0 : index
    %4 = vector.load %arg3[%c0_3, %c0_4] : memref<32x256xbf16, #tpu.memory_space<vmem>>, vector<32x256xbf16>
    tpu.vector_store %arg3[%c0_3, %c0_4], %3 {strides = array<i32>} : memref<32x256xbf16, #tpu.memory_space<vmem>>, vector<32x256xbf16>,
    %5 = arith.extf %3 : vector<32x256xbf16> to vector<32x256xf32>
    %c256_i32 = arith.constant 256 : i32
    %6 = arith.muli %arg0, %c256_i32 : i32
    %c512_i32 = arith.constant 512 : i32
    %7 = arith.subi %c512_i32, %6 : i32
    %c256_i32_5 = arith.constant 256 : i32
    %8 = arith.minsi %c256_i32_5, %7 : i32
    %9 = tpu.iota {dimensions = array<i32: 1>} : vector<32x256xi32>
    %cst_6 = arith.constant dense<0.000000e+00> : vector<32xf32>
    %10 = vector.multi_reduction <add>, %5, %cst_6 [1] : vector<32x256xf32> to vector<32xf32>
    %11 = vector.shape_cast %10 : vector<32xf32> to vector<32x1xf32>
    %12 = arith.sitofp %8 : i32 to f32
    %13 = vector.broadcast %12 : f32 to vector<32x1xf32>
    %14 = arith.divf %11, %13 : vector<32x1xf32>
    %15 = vector.broadcast %8 : i32 to vector<32x256xi32>
    %16 = arith.cmpi slt, %9, %15 : vector<32x256xi32>
    %17 = vector.broadcast %14 : vector<32x1xf32> to vector<32x256xf32>
    %18 = arith.subf %5, %17 : vector<32x256xf32>
    %cst_7 = arith.constant 0.000000e+00 : f32
    %19 = vector.broadcast %cst_7 : f32 to vector<32x256xf32>
    %20 = arith.select %16, %18, %19 : vector<32x256xi1>, vector<32x256xf32>
    %c0_8 = arith.constant 0 : index
    %c0_9 = arith.constant 0 : index
    %c0_10 = arith.constant 0 : index
    %21 = vector.load %arg4[%c0_8, %c0_9, %c0_10] : memref<1x32x2xf32, #tpu.memory_space<vmem>>, vector<1x32x1xf32>
    %22 = vector.shape_cast %21 : vector<1x32x1xf32> to vector<32x1xf32>
    %23 = vector.shape_cast %11 : vector<32x1xf32> to vector<1x32x1xf32>
    tpu.vector_store %arg4[%c0_8, %c0_9, %c0_10], %23 {strides = array<i32>} : memref<1x32x2xf32, #tpu.memory_space<vmem>>, vector<1x32x1xf32>,
    %24 = arith.mulf %20, %20 : vector<32x256xf32>
    %cst_11 = arith.constant dense<0.000000e+00> : vector<32xf32>
    %25 = vector.multi_reduction <add>, %24, %cst_11 [1] : vector<32x256xf32> to vector<32xf32>
    %26 = vector.shape_cast %25 : vector<32xf32> to vector<32x1xf32>
    %c0_12 = arith.constant 0 : index
    %c0_13 = arith.constant 0 : index
    %c1 = arith.constant 1 : index
    %27 = vector.load %arg4[%c0_12, %c0_13, %c1] : memref<1x32x2xf32, #tpu.memory_space<vmem>>, vector<1x32x1xf32>
    %28 = vector.shape_cast %27 : vector<1x32x1xf32> to vector<32x1xf32>
    %29 = vector.shape_cast %26 : vector<32x1xf32> to vector<1x32x1xf32>
    tpu.vector_store %arg4[%c0_12, %c0_13, %c1], %29 {strides = array<i32>} : memref<1x32x2xf32, #tpu.memory_space<vmem>>, vector<1x32x1xf32>,
    return
  }
  func.func @transform_0(%arg0: i32) -> (i32, i32) {
    %c0_i32 = arith.constant 0 : i32
    %c0_i32_0 = arith.constant 0 : i32
    %c0_i32_1 = arith.constant 0 : i32
    return %c0_i32, %c0_i32_0 : i32, i32
  }
  func.func @transform_1(%arg0: i32) -> (i32, i32) {
    %c0_i32 = arith.constant 0 : i32
    %c0_i32_0 = arith.constant 0 : i32
    return %c0_i32, %arg0 : i32, i32
  }
  func.func @transform_2(%arg0: i32) -> (i32, i32) {
    %c0_i32 = arith.constant 0 : i32
    %c0_i32_0 = arith.constant 0 : i32
    return %c0_i32, %arg0 : i32, i32
  }
  func.func @transform_3(%arg0: i32) -> (i32, i32, i32) {
    %c0_i32 = arith.constant 0 : i32
    %c0_i32_0 = arith.constant 0 : i32
    %c0_i32_1 = arith.constant 0 : i32
    return %arg0, %c0_i32, %c0_i32_0 : i32, i32, i32
  }
}

</mosaic_0001>

<llo_original>
// kernel: tpu_custom_call.1
$region0: #{tpu_custom_call.1}
  #allocation0 [shape = 'u32[]', space=smem, size = 0x4, offset = 0x4, fixed_abs, tag = 'smem constant byte address 0x4 - core index']
  #allocation1 [shape = 'u32[72,128]{1,0:T(1,128)}', space=vmem, size = 0x9000, scoped, tag = 'internal scratch']
  %s0 = inlined_call_operand.vmem [shape: bf16[32,16], index: 0, kind: input, shape index: {}]
  %s1 = inlined_call_operand.hbm [shape: bf16[16,512], index: 1, kind: input, shape index: {}]
  %s2 = inlined_call_operand.hbm [shape: bf16[32,512], index: 2, kind: output, shape index: {0}]
  %s3 = inlined_call_operand.vmem [shape: f32[2,32,2], index: 3, kind: output, shape index: {1}]
  %4 = xla_tuple %s2, %s3
  %s5 = sld [smem:[#allocation0]]
  $region53: #{tpu_custom_call.1} parent=0
    _
  %s7 = ssub.s32 1, %s5
  %s8 = scalar_select 0, %s7, %s5
  $region1: #{tpu_custom_call.1} parent=0
    #allocation2 [shape = 'u8[16384]{0}', space=vmem, size = 0x4000, scoped, tag = 'input window, operand 1']
    #allocation3 [shape = 's32[2]{0}', space=sflag, size = 0x8, scoped, tag = 'scoped memory for tpu_custom_call.1']
    #allocation4 [shape = 's32[2]{0}', space=sflag, size = 0x8, scoped, tag = 'scoped memory for tpu_custom_call.1']
    #allocation5 [shape = 'u8[32768]{0}', space=vmem, size = 0x8000, scoped, tag = 'output window, operand 0']
    %9 = vsyncpa [#allocation3], 0
    %s10 = scalar_lea.sflag [#allocation3], 1
    %11 = vsyncpa %s10, 0
    %12 = vsyncpa [#allocation4], 0
    %s13 = scalar_lea.sflag [#allocation4], 1
    %14 = vsyncpa %s13, 0
    loop: start=0, step=1, limit=4
    $region2: #{tpu_custom_call.1} parent=1 // loop_pre_header
      _
    $region3: #{tpu_custom_call.1} parent=1 // loop_header
      %s16 = sphi 0, %s20
      %p17 = scmp.ge.s32.totalorder %s16, 4
      %s24 = sphi 0, %s24
      %s26 = sphi 0, %s24
      %s27 = sphi 0, %s26
      %s41 = sphi 0, %s27
      %s47 = sphi 0, %s49
      %s50 = sphi 0, %s47
      %s51 = sphi 0, %s50
      %s67 = sphi 0, %s51
      %s73 = sphi 0, %s75
      %s76 = sphi 0, %s73
      %s77 = sphi 0, %s76
      %s93 = sphi 0, %s77
      %s99 = sphi 0, %s101
      %s102 = sphi 0, %s99
      %s103 = sphi 0, %s102
      %s119 = sphi 0, %s103
    $region4: #{tpu_custom_call.1} parent=1 // loop_header_branch
      %19 = sbr.rel (%p17) target = $region8
    $region5: #{tpu_custom_call.1} parent=1 // loop_body
      %s21 = ssub.s32 %s16, 1
      %s22 = ssub.s32 %s16, 2
      %s23 = sadd.s32 %s16, 1
      %s25 = sadd.s32 %s24, 1
      %p28 = scmp.eq.s32.totalorder %s16, 1
      %p29 = scmp.ne.s32.totalorder %s24, %s26
      %p30 = scmp.eq.s32.totalorder %s16, 0
      %p31 = por %p29, %p30
      %p32 = scmp.ne.s32.totalorder %s24, %s26
      %p33 = scmp.eq.s32.totalorder %s21, 1
      %p34 = por %p32, %p33
      %p35 = scmp.ne.s32.totalorder %s26, %s27
      %p36 = scmp.eq.s32.totalorder %s21, 0
      %p37 = por %p35, %p36
      %p38 = scmp.ne.s32.totalorder %s26, %s27
      %p39 = scmp.eq.s32.totalorder %s22, 1
      %p40 = por %p38, %p39
      %p42 = scmp.ne.s32.totalorder %s27, %s41
      %p43 = scmp.eq.s32.totalorder %s22, 0
      %p44 = por %p42, %p43
      %s45 = ssub.s32 %s16, %s23
      %p46 = scmp.eq.s32.totalorder %s45, 0
      %s48 = sadd.s32 %s47, 1
      %s49 = scalar_select %p46, %s47, %s48
      %p52 = pneg %p46
      %p53 = scmp.eq.s32.totalorder %s16, 1
      %p54 = por %p52, %p53
      %p55 = scmp.ne.s32.totalorder %s47, %s50
      %p56 = scmp.eq.s32.totalorder %s16, 0
      %p57 = por %p55, %p56
      %p58 = scmp.ne.s32.totalorder %s47, %s50
      %p59 = scmp.eq.s32.totalorder %s21, 1
      %p60 = por %p58, %p59
      %p61 = scmp.ne.s32.totalorder %s50, %s51
      %p62 = scmp.eq.s32.totalorder %s21, 0
      %p63 = por %p61, %p62
      %p64 = scmp.ne.s32.totalorder %s50, %s51
      %p65 = scmp.eq.s32.totalorder %s22, 1
      %p66 = por %p64, %p65
      %p68 = scmp.ne.s32.totalorder %s51, %s67
      %p69 = scmp.eq.s32.totalorder %s22, 0
      %p70 = por %p68, %p69
      %s71 = ssub.s32 %s16, %s23
      %p72 = scmp.eq.s32.totalorder %s71, 0
      %s74 = sadd.s32 %s73, 1
      %s75 = scalar_select %p72, %s73, %s74
      %p78 = pneg %p72
      %p79 = scmp.eq.s32.totalorder %s16, 1
      %p80 = por %p78, %p79
      %p81 = scmp.ne.s32.totalorder %s73, %s76
      %p82 = scmp.eq.s32.totalorder %s16, 0
      %p83 = por %p81, %p82
      %p84 = scmp.ne.s32.totalorder %s73, %s76
      %p85 = scmp.eq.s32.totalorder %s21, 1
      %p86 = por %p84, %p85
      %p87 = scmp.ne.s32.totalorder %s76, %s77
      %p88 = scmp.eq.s32.totalorder %s21, 0
      %p89 = por %p87, %p88
      %p90 = scmp.ne.s32.totalorder %s76, %s77
      %p91 = scmp.eq.s32.totalorder %s22, 1
      %p92 = por %p90, %p91
      %p94 = scmp.ne.s32.totalorder %s77, %s93
      %p95 = scmp.eq.s32.totalorder %s22, 0
      %p96 = por %p94, %p95
      %s97 = ssub.s32 %s16, %s23
      %p98 = scmp.eq.s32.totalorder %s97, 0
      %s100 = sadd.s32 %s99, 1
      %s101 = scalar_select %p98, %s99, %s100
      %p104 = pneg %p98
      %p105 = scmp.eq.s32.totalorder %s16, 1
      %p106 = por %p104, %p105
      %p107 = scmp.ne.s32.totalorder %s99, %s102
      %p108 = scmp.eq.s32.totalorder %s16, 0
      %p109 = por %p107, %p108
      %p110 = scmp.ne.s32.totalorder %s99, %s102
      %p111 = scmp.eq.s32.totalorder %s21, 1
      %p112 = por %p110, %p111
      %p113 = scmp.ne.s32.totalorder %s102, %s103
      %p114 = scmp.eq.s32.totalorder %s21, 0
      %p115 = por %p113, %p114
      %p116 = scmp.ne.s32.totalorder %s102, %s103
      %p117 = scmp.eq.s32.totalorder %s22, 1
      %p118 = por %p116, %p117
      %p120 = scmp.ne.s32.totalorder %s103, %s119
      %p121 = scmp.eq.s32.totalorder %s22, 0
      %p122 = por %p120, %p121
      %p123 = scmp.le.s32.totalorder 1, %s16
      %p124 = scmp.lt.s32.totalorder %s16, 3
      %p125 = pnand %p123, %p124
      %p126 = pneg %p125
      // Predicated region
      $region9: #{tpu_custom_call.1} parent=5 // pred_check
        _
      $region10: #{tpu_custom_call.1} parent=5 // pred_check_branch
        %128 = sbr.rel (%p125) target = $region12
      $region11: #{tpu_custom_call.1} parent=5 // pred_region
        %s129 = ssub.s32 %s16, 1
        // Predicated region
        $region13: #{tpu_custom_call.1} parent=11 // pred_check
          %p130 = pneg %p37
        $region14: #{tpu_custom_call.1} parent=11 // pred_check_branch
          %132 = sbr.rel (%p130) target = $region16
        $region15: #{tpu_custom_call.1} parent=11 // pred_region
          _
        $region16: #{tpu_custom_call.1} parent=11 // pred_fallthru
          _
      $region12: #{tpu_custom_call.1} parent=5 // pred_fallthru
        _
      %p133 = scmp.lt.s32.totalorder %s16, 2
      // Predicated region
      $region17: #{tpu_custom_call.1} parent=5 // pred_check
        %p134 = pneg %p133
      $region18: #{tpu_custom_call.1} parent=5 // pred_check_branch
        %136 = sbr.rel (%p134) target = $region20
      $region19: #{tpu_custom_call.1} parent=5 // pred_region
        // Predicated region
        $region21: #{tpu_custom_call.1} parent=19 // pred_check
          %p137 = pneg %p57
        $region22: #{tpu_custom_call.1} parent=19 // pred_check_branch
          %139 = sbr.rel (%p137) target = $region24
        $region23: #{tpu_custom_call.1} parent=19 // pred_region
          %s140 = sand.u32 %s47, 1
          %s141 = scalar_lea.sflag [#allocation3], %s140
          %s142 = sand.u32 %s47, 1
          %s143 = smul.addr %s142, 16
          %s144 = scalar_lea.vmem [#allocation2], %s143
          %s145 = smul.u32 2, %s16
          %147 = vsyncadd %s141, 0
          %s148 = smul.addr %s145, 4
          %s149 = scalar_lea.hbm %s1, %s148
          %s150 = sshll.u32 %s149, 4
          %s151 = int_to_ptr.hbm [resolvable:$true] %s150
          %s152 = sshll.u32 %s144, 4
          %s153 = int_to_ptr.vmem [resolvable:$true] %s152
          %158 = dma.hbm_to_vmem [thread:$0]  %s151, 256, %s153, %s141, 256, 128, 8
        $region24: #{tpu_custom_call.1} parent=19 // pred_fallthru
          _
      $region20: #{tpu_custom_call.1} parent=5 // pred_fallthru
        _
      %p159 = scmp.le.s32.totalorder 1, %s16
      %p160 = scmp.lt.s32.totalorder %s16, 3
      %p161 = pnand %p159, %p160
      %p162 = pneg %p161
      // Predicated region
      $region25: #{tpu_custom_call.1} parent=5 // pred_check
        _
      $region26: #{tpu_custom_call.1} parent=5 // pred_check_branch
        %164 = sbr.rel (%p161) target = $region28
      $region27: #{tpu_custom_call.1} parent=5 // pred_region
        %s165 = ssub.s32 %s16, 1
        %s166 = sand.u32 %s50, 1
        %s167 = scalar_lea.sflag [#allocation3], %s166
        %s168 = sand.u32 %s50, 1
        %s169 = smul.addr %s168, 16
        %s170 = scalar_lea.vmem [#allocation2], %s169
        // Predicated region
        $region29: #{tpu_custom_call.1} parent=27 // pred_check
          %p171 = pneg %p63
        $region30: #{tpu_custom_call.1} parent=27 // pred_check_branch
          %173 = sbr.rel (%p171) target = $region32
        $region31: #{tpu_custom_call.1} parent=27 // pred_region
          %175 = dma.done %s167, 256
        $region32: #{tpu_custom_call.1} parent=27 // pred_fallthru
          _
        %p176 = pneg %p37
        %p177 = pneg %p34
        %s178 = sand.u32 %s50, 1
        %s179 = scalar_lea.sflag [#allocation3], %s178
        %s180 = sand.u32 %s50, 1
        %s181 = smul.addr %s180, 16
        %s182 = scalar_lea.vmem [#allocation2], %s181
        %p183 = pneg %p63
        %p184 = pneg %p60
        %p185 = pneg %p89
        %p186 = pneg %p86
        %s187 = sand.u32 %s76, 1
        %s188 = scalar_lea.sflag [#allocation4], %s187
        %s189 = sand.u32 %s76, 1
        %s190 = smul.addr %s189, 32
        %s191 = scalar_lea.vmem [#allocation5], %s190
        %p192 = pneg %p115
        %p193 = pneg %p112
        %p194 = scmp.lt.s32.totalorder %s21, 1
        %s195 = scalar_select %p194, %s21, 1
        %s196 = smul.addr %s195, 4
        %s197 = smul.addr %s196, 8
        %s198 = scalar_lea.vmem %s3, %s197
        %s199 = smul.u32 2, %s21
        %s200 = smul.u32 2, %s21
        %p201 = scmp.lt.s32.totalorder %s21, 1
        %s202 = scalar_select %p201, %s21, 1
        %s203 = smul.addr %s202, 4
        %s204 = smul.addr %s203, 8
        %s205 = scalar_lea.vmem %s3, %s204
        %v207 = vld [vmem:[%s0] sm:$0xf]
        %v208 = vld [vmem:[%s0 + $0x4] sm:$0xf]
        %v209 = vld [vmem:[%s0 + $0x8] sm:$0xf]
        %v210 = vld [vmem:[%s0 + $0xc] sm:$0xf]
        %v211 = vld [vmem:[%s170] sm:$0xff]
        %v212 = vld [vmem:[%s170 + $0x8] sm:$0xff]
        %v217 = vunpack.c.l.b16 %v207
        %v218 = vunpack.c.l.b16 %v208
        %v219 = vunpack.c.l.b16 %v209
        %v220 = vunpack.c.l.b16 %v210
        %v221 = vpack.c.b16 %v218, %v217
        %v222 = vpack.c.b16 %v220, %v219
        %v225 = vunpack.c.l.b16 %v211
        %v226 = vunpack.c.h.b16 %v211
        %v227 = vunpack.c.l.b16 %v212
        %v228 = vunpack.c.h.b16 %v212
        %v229 = vpack.c.b16 %v227, %v225
        %v230 = vpack.c.b16 %v228, %v226
        %vm233 = vcmask 130048
        %v235 = vsel %vm233, %v221, 0
        %v238 = vsel %vm233, %v222, 0
        %240 = vmatpush.bf16.msra.mxu0 0
        %241 = vmatpush.bf16.msra.mxu0 0
        %242 = vmatpush.bf16.msra.mxu0 0
        %243 = vmatpush.bf16.msra.mxu0 0
        %244 = vmatpush.bf16.msra.mxu0 0
        %245 = vmatpush.bf16.msra.mxu0 0
        %246 = vmatpush.bf16.msra.mxu0 0
        %247 = vmatpush.bf16.msra.mxu0 %v229
        %248 = vmatmul.bf16.gmra.mxu0 %v235
        %v249 = vpop.f32.mrf.mxu0
        %v250 = vadd.f32 0.0, %v249
        %v251 = vpop.f32.mrf.mxu0
        %v252 = vadd.f32 0.0, %v251
        %253 = vmatmul.bf16.gmra.mxu0 %v238
        %v254 = vpop.f32.mrf.mxu0
        %v255 = vadd.f32 0.0, %v254
        %v256 = vpop.f32.mrf.mxu0
        %v257 = vadd.f32 0.0, %v256
        %258 = vdwg.mxu0
        %259 = vmatpush.bf16.msra.mxu0 0
        %260 = vmatpush.bf16.msra.mxu0 0
        %261 = vmatpush.bf16.msra.mxu0 0
        %262 = vmatpush.bf16.msra.mxu0 0
        %263 = vmatpush.bf16.msra.mxu0 0
        %264 = vmatpush.bf16.msra.mxu0 0
        %265 = vmatpush.bf16.msra.mxu0 0
        %266 = vmatpush.bf16.msra.mxu0 %v230
        %267 = vmatmul.bf16.gmra.mxu0 %v235
        %v268 = vpop.f32.mrf.mxu0
        %v269 = vadd.f32 0.0, %v268
        %v270 = vpop.f32.mrf.mxu0
        %v271 = vadd.f32 0.0, %v270
        %272 = vmatmul.bf16.gmra.mxu0 %v238
        %v273 = vpop.f32.mrf.mxu0
        %v274 = vadd.f32 0.0, %v273
        %v275 = vpop.f32.mrf.mxu0
        %v276 = vadd.f32 0.0, %v275
        %277 = vdwg.mxu0
        %v278 = vpack.c.bf16 %v269, %v250
        %v279 = vpack.c.bf16 %v271, %v252
        %v280 = vpack.c.bf16 %v274, %v255
        %v281 = vpack.c.bf16 %v276, %v257
        %282 = vst [vmem:[%s191] sm:$0xff] %v278
        %283 = vst [vmem:[%s191 + $0x8] sm:$0xff] %v279
        %284 = vst [vmem:[%s191 + $0x10] sm:$0xff] %v280
        %285 = vst [vmem:[%s191 + $0x18] sm:$0xff] %v281
        %v286 = vunpack.c.l.bf16 %v278
        %v287 = vunpack.c.h.bf16 %v278
        %v288 = vunpack.c.l.bf16 %v279
        %v289 = vunpack.c.h.bf16 %v279
        %v290 = vunpack.c.l.bf16 %v280
        %v291 = vunpack.c.h.bf16 %v280
        %v292 = vunpack.c.l.bf16 %v281
        %v293 = vunpack.c.h.bf16 %v281
        %s294 = smul.u32 %s21, 256
        %s295 = ssub.s32 512, %s294
        %p296 = scmp.lt.s32.totalorder %s295, 256
        %s297 = scalar_select %p296, %s295, 256
        %v298 = vlaneseq
        %v299 = vand.u32 %v298, 127
        %v300 = vadd.s32 %v299, 128
        %v301 = vadd.f32 %v286, %v287
        %302 = vadd.xlane.f32.xlu0 %v301
        %v303 = vpop.xlane.xlu0 %302
        %v304 = vadd.f32 %v288, %v289
        %305 = vadd.xlane.f32.xlu0 %v304
        %v306 = vpop.xlane.xlu0 %305
        %v307 = vadd.f32 %v290, %v291
        %308 = vadd.xlane.f32.xlu0 %v307
        %v309 = vpop.xlane.xlu0 %308
        %v310 = vadd.f32 %v292, %v293
        %311 = vadd.xlane.f32.xlu0 %v310
        %v312 = vpop.xlane.xlu0 %311
        %s313 = scvt.s32.f32 %s297
        %v314 = vstv %s313
        %v315 = vrcp.pop %v314
        %v316 = vmul.f32 %v314, %v315
        %v317 = vsub.f32 1.0, %v316
        %v318 = vmul.f32 %v315, %v317
        %v319 = vadd.f32 %v315, %v318
        %vm320 = vweird.f32 %v314
        %vm321 = vweird.f32 %v315
        %vm322 = vmor %vm320, %vm321
        %v323 = vsel %vm322, %v315, %v319
        %v324 = vand.u32 2147483647, %v314
        %vm325 = vcmp.eq.f32.partialorder %v324, 8.507059e+37
        %v326 = vand.u32 %v314, 2147483648
        %v327 = vor.u32 1.1754944e-38, %v326
        %v328 = vsel %vm325, %v327, %v323
        %v329 = vmul.f32 %v303, %v328
        %v330 = vmul.f32 %v306, %v328
        %v331 = vmul.f32 %v309, %v328
        %v332 = vmul.f32 %v312, %v328
        %v333 = vstv %s297
        %vm334 = vcmp.lt.s32.totalorder %v299, %v333
        %vm335 = vcmp.lt.s32.totalorder %v300, %v333
        %v336 = vsub.f32 %v286, %v329
        %v337 = vsub.f32 %v287, %v329
        %v338 = vsub.f32 %v288, %v330
        %v339 = vsub.f32 %v289, %v330
        %v340 = vsub.f32 %v290, %v331
        %v341 = vsub.f32 %v291, %v331
        %v342 = vsub.f32 %v292, %v332
        %v343 = vsub.f32 %v293, %v332
        %v344 = vsel %vm334, %v336, 0.0
        %v345 = vsel %vm335, %v337, 0.0
        %v346 = vsel %vm334, %v338, 0.0
        %v347 = vsel %vm335, %v339, 0.0
        %v348 = vsel %vm334, %v340, 0.0
        %v349 = vsel %vm335, %v341, 0.0
        %v350 = vsel %vm334, %v342, 0.0
        %v351 = vsel %vm335, %v343, 0.0
        %vm352 = vcmask 7168
        %353 = vst.msk [vmem:[%s205] sm:$0xff] %vm352, %v303
        %354 = vst.msk [vmem:[%s205 + $0x8] sm:$0xff] %vm352, %v306
        %355 = vst.msk [vmem:[%s205 + $0x10] sm:$0xff] %vm352, %v309
        %356 = vst.msk [vmem:[%s205 + $0x18] sm:$0xff] %vm352, %v312
        %v357 = vmul.f32 %v344, %v344
        %v358 = vmul.f32 %v345, %v345
        %v359 = vmul.f32 %v346, %v346
        %v360 = vmul.f32 %v347, %v347
        %v361 = vmul.f32 %v348, %v348
        %v362 = vmul.f32 %v349, %v349
        %v363 = vmul.f32 %v350, %v350
        %v364 = vmul.f32 %v351, %v351
        %v365 = vadd.f32 %v357, %v358
        %366 = vadd.xlane.f32.xlu0 %v365
        %v367 = vpop.xlane.xlu0 %366
        %v368 = vadd.f32 %v359, %v360
        %369 = vadd.xlane.f32.xlu0 %v368
        %v370 = vpop.xlane.xlu0 %369
        %v371 = vadd.f32 %v361, %v362
        %372 = vadd.xlane.f32.xlu0 %v371
        %v373 = vpop.xlane.xlu0 %372
        %v374 = vadd.f32 %v363, %v364
        %375 = vadd.xlane.f32.xlu0 %v374
        %v376 = vpop.xlane.xlu0 %375
        %vm377 = vcmask 15368
        %378 = vst.msk [vmem:[%s205] sm:$0xff] %vm377, %v367
        %379 = vst.msk [vmem:[%s205 + $0x8] sm:$0xff] %vm377, %v370
        %380 = vst.msk [vmem:[%s205 + $0x10] sm:$0xff] %vm377, %v373
        %381 = vst.msk [vmem:[%s205 + $0x18] sm:$0xff] %vm377, %v376
        %s382 = sand.u32 %s76, 1
        %s383 = scalar_lea.sflag [#allocation4], %s382
        %s384 = sand.u32 %s76, 1
        %s385 = smul.addr %s384, 32
        %s386 = scalar_lea.vmem [#allocation5], %s385
        %p387 = scmp.lt.s32.totalorder %s21, 1
        %s388 = scalar_select %p387, %s21, 1
        %s389 = smul.addr %s388, 4
        %s390 = smul.addr %s389, 8
        %s391 = scalar_lea.vmem %s3, %s390
        // Predicated region
        $region33: #{tpu_custom_call.1} parent=27 // pred_check
          %p392 = pneg %p86
        $region34: #{tpu_custom_call.1} parent=27 // pred_check_branch
          %394 = sbr.rel (%p392) target = $region36
        $region35: #{tpu_custom_call.1} parent=27 // pred_region
          %s395 = smul.u32 2, %s21
          %397 = vsyncadd %s383, 0
          %s398 = smul.addr %s395, 4
          %s399 = scalar_lea.hbm %s2, %s398
          %s400 = sshll.u32 %s386, 4
          %s401 = int_to_ptr.vmem [resolvable:$true] %s400
          %s402 = sshll.u32 %s399, 4
          %s403 = int_to_ptr.hbm [resolvable:$true] %s402
          %408 = dma.vmem_to_hbm [thread:$0]  %s401, 512, %s403, %s383, 128, 256, 8
        $region36: #{tpu_custom_call.1} parent=27 // pred_fallthru
          _
        // Predicated region
        $region37: #{tpu_custom_call.1} parent=27 // pred_check
          %p409 = pneg %p112
        $region38: #{tpu_custom_call.1} parent=27 // pred_check_branch
          %411 = sbr.rel (%p409) target = $region40
        $region39: #{tpu_custom_call.1} parent=27 // pred_region
          _
        $region40: #{tpu_custom_call.1} parent=27 // pred_fallthru
          _
      $region28: #{tpu_custom_call.1} parent=5 // pred_fallthru
        _
      %p412 = scmp.le.s32.totalorder 2, %s16
      // Predicated region
      $region41: #{tpu_custom_call.1} parent=5 // pred_check
        %p413 = pneg %p412
      $region42: #{tpu_custom_call.1} parent=5 // pred_check_branch
        %415 = sbr.rel (%p413) target = $region44
      $region43: #{tpu_custom_call.1} parent=5 // pred_region
        %s416 = ssub.s32 %s16, 2
        // Predicated region
        $region45: #{tpu_custom_call.1} parent=43 // pred_check
          %p417 = pneg %p92
        $region46: #{tpu_custom_call.1} parent=43 // pred_check_branch
          %419 = sbr.rel (%p417) target = $region48
        $region47: #{tpu_custom_call.1} parent=43 // pred_region
          %s420 = sand.u32 %s77, 1
          %s421 = scalar_lea.sflag [#allocation4], %s420
          %s422 = sand.u32 %s77, 1
          %s423 = smul.addr %s422, 32
          %s424 = scalar_lea.vmem [#allocation5], %s423
          %426 = dma.done %s421, 512
        $region48: #{tpu_custom_call.1} parent=43 // pred_fallthru
          _
        // Predicated region
        $region49: #{tpu_custom_call.1} parent=43 // pred_check
          %p427 = pneg %p118
        $region50: #{tpu_custom_call.1} parent=43 // pred_check_branch
          %429 = sbr.rel (%p427) target = $region52
        $region51: #{tpu_custom_call.1} parent=43 // pred_region
          %p430 = scmp.lt.s32.totalorder %s22, 1
          %s431 = scalar_select %p430, %s22, 1
          %s432 = smul.addr %s431, 4
          %s433 = smul.addr %s432, 8
          %s434 = scalar_lea.vmem %s3, %s433
        $region52: #{tpu_custom_call.1} parent=43 // pred_fallthru
          _
      $region44: #{tpu_custom_call.1} parent=5 // pred_fallthru
        _
    $region6: #{tpu_custom_call.1} parent=1 // loop_footer
      %s20 = sadd.s32 1, %s16
    $region7: #{tpu_custom_call.1} parent=1 // loop_footer_branch
      %15 = sbr.rel target = $region3
    $region8: #{tpu_custom_call.1} parent=1 // loop_exit
      _
    %435 = vsyncpa [#allocation3], 1
    %s436 = scalar_lea.sflag [#allocation3], 1
    %437 = vsyncpa %s436, 1
    %438 = vsyncpa [#allocation4], 1
    %s439 = scalar_lea.sflag [#allocation4], 1
    %440 = vsyncpa %s439, 1

</llo_original>
